<compile_context>
chip_gen: v7x
topology: tpu7x:2x2x1
jax: 0.10.0
libtpu: 0.0.40
codegen_flags: <defaults>
</compile_context>

<pallas_src>
import jax
import jax.numpy as jnp
from jax.experimental import pallas as pl
from jax.experimental.pallas import tpu as pltpu

LANES = 128
SUBLANES = 8
CHUNK_ROWS = 512                 # inner reduction chunk: (512,128) f32 temp = 256 KiB
INPUT_VMEM_BUDGET = 24 << 20     # target for double-buffered bytes of all 3 inputs


def _round_up(x, m):
    return ((x + m - 1) // m) * m


def _cdiv(a, b):
    return -(-a // b)


def _plan_layout(n, bytes_per_elem_sum):
    """Plan the (rows, 128) slab tiling.

    bytes_per_elem_sum: summed itemsize of the three streamed operands
    (F, 2G, param) for a single element.
    Returns (block_rows, splits, blocks_per_split, total_rows, n_pad).
    """
    rows = _cdiv(max(int(n), 1), LANES)
    rows16 = _round_up(rows, 16)          # 16 rows: min tile even for bf16 operands

    # Bytes-budget tile (perf feedback): fill ~INPUT_VMEM_BUDGET across the two
    # pipeline buffers of all three operands (all-f32 -> 8192 rows, 4 MiB/operand).
    target_rows = max(16, (INPUT_VMEM_BUDGET // (2 * LANES * bytes_per_elem_sum)) // 16 * 16)
    block_rows = min(target_rows, rows16)
    num_blocks = _cdiv(rows16, block_rows)

    # Force two splits whenever the data can be halved into >=16-row blocks so
    # both v7x TensorCores stream half the data each (one TC would otherwise
    # leave half the chip's DMA/HBM capability idle for medium-sized models).
    if num_blocks == 1 and block_rows >= 32:
        block_rows = _round_up(_round_up(block_rows, 32) // 2, 16)
        num_blocks = _cdiv(rows16, block_rows)

    splits = 2 if num_blocks >= 2 else 1
    blocks_per_split = _cdiv(num_blocks, splits)
    slots = splits * blocks_per_split
    # Re-fit block_rows to the slot count to minimise zero padding; this never
    # exceeds the VMEM budget chosen above.
    block_rows = _round_up(_cdiv(rows16, slots), 16)
    total_rows = slots * block_rows
    return block_rows, splits, blocks_per_split, total_rows, total_rows * LANES


def _to_slab(parts, layout, dtype):
    """Concat flattened parts, zero-pad and reshape to a lane-dense (rows, 128) slab."""
    total_rows, n_pad = layout[3], layout[4]
    flat = jnp.concatenate([jnp.asarray(p).astype(dtype).reshape(-1) for p in parts])
    flat = jnp.pad(flat, (0, n_pad - flat.shape[0]))
    return flat.reshape(total_rows, LANES)


def _ewc_kernel(f_ref, g2_ref, p_ref, out_ref):
    """Accumulate sum(F*p^2 - 2G*p) into a resident (1, 8, 128) f32 accumulator."""
    @pl.when(pl.program_id(1) == 0)
    def _():
        out_ref[...] = jnp.zeros_like(out_ref)

    block_rows = f_ref.shape[0]
    chunk = min(CHUNK_ROWS, block_rows)
    n_full = block_rows // chunk
    tail = block_rows - n_full * chunk

    def accum(row0, nrows):
        sl = pl.ds(row0, nrows)
        p = p_ref[sl, :].astype(jnp.float32)
        f = f_ref[sl, :].astype(jnp.float32)
        g2 = g2_ref[sl, :].astype(jnp.float32)
        prod = p * (f * p - g2)
        # Leading-axis sum over whole vregs: pure VPU adds, no XLU in the hot loop.
        out_ref[...] += prod.reshape(1, nrows // SUBLANES, SUBLANES, LANES).sum(axis=1)

    if n_full == 1:
        accum(0, chunk)
    else:
        @pl.loop(0, n_full)
        def _(c):
            accum(pl.multiple_of(c * chunk, chunk), chunk)
    if tail:
        accum(n_full * chunk, tail)


def _ewc_quadratic_sum(f2d, g2_2d, p2d, layout, vmem_limit_bytes):
    """sum(F*p^2 - 2G*p) over the padded slabs, returned as an f32 scalar."""
    block_rows, splits, bps, total_rows, n_pad = layout

    in_spec = pl.BlockSpec((block_rows, LANES), lambda c, i: (c * bps + i, 0))
    out_spec = pl.BlockSpec((1, SUBLANES, LANES), lambda c, i: (c, 0, 0))

    cost = pl.CostEstimate(
        flops=4 * n_pad,
        transcendentals=0,
        bytes_accessed=int(f2d.nbytes + g2_2d.nbytes + p2d.nbytes
                           + splits * SUBLANES * LANES * 4),
    )

    partials = pl.pallas_call(
        _ewc_kernel,
        out_shape=jax.ShapeDtypeStruct((splits, SUBLANES, LANES), jnp.float32),
        grid_spec=pltpu.PrefetchScalarGridSpec(
            num_scalar_prefetch=0,
            grid=(splits, bps),
            in_specs=[in_spec, in_spec, in_spec],
            out_specs=out_spec,
        ),
        compiler_params=pltpu.CompilerParams(
            # TODO(synk): if xprof on v7x shows one TensorCore idle, switch the
            # split axis to pltpu.CORE_PARALLEL (or explicit pl.core_map).
            dimension_semantics=("parallel", "arbitrary"),
            vmem_limit_bytes=int(vmem_limit_bytes),
        ),
        cost_estimate=cost,
    )(f2d, g2_2d, p2d)

    # Tiny final cross-lane reduce of splits*1024 partials (done once, in XLA).
    return jnp.sum(partials)


class EWC:
    """JAX/Pallas port of the PyTorch EWC module's forward pass."""

    def __init__(self, static_dtype=None):
        self.ewc_lambda = 10
        self.tasks_encountered = []
        self.fisher = {}   # task_id -> {name: array}
        self.optpar = {}   # task_id -> {name: array}
        # static_dtype: force the cached F / 2G slabs to this dtype (e.g.
        # jnp.bfloat16 halves 2 of the 3 HBM streams). None -> native dtype.
        self._static_dtype = static_dtype
        self._static_cache = None

    def invalidate_cache(self):
        """Call after mutating fisher/optpar in place for an existing task id."""
        self._static_cache = None

    def _static_slabs(self, named_params):
        # NOTE: the key covers tasks + parameter structure; mutating fisher /
        # optpar in place for an already-registered task requires invalidate_cache().
        key = (tuple(self.tasks_encountered),
               tuple((name, tuple(jnp.asarray(p).shape), str(jnp.asarray(p).dtype))
                     for name, p in named_params))
        if self._static_cache is not None and self._static_cache[0] == key:
            return self._static_cache[1:]

        # Algebraic collapse of the task dimension (accumulated in f32):
        #   sum_t f_t*(o_t - p)^2 = F*p^2 - (2G)*p + C
        f_parts, g2_parts = [], []
        c_const = jnp.zeros((), jnp.float32)
        n = 0
        src_dtypes = set()
        for name, p in named_params:
            p = jnp.asarray(p)
            F = jnp.zeros(p.shape, jnp.float32)
            G = jnp.zeros(p.shape, jnp.float32)
            for task_id in self.tasks_encountered:
                f = jnp.asarray(self.fisher[task_id][name])
                o = jnp.asarray(self.optpar[task_id][name])
                if f.shape != p.shape or o.shape != p.shape:
                    raise ValueError(
                        f"fisher/optpar shape mismatch for {name!r}: "
                        f"{f.shape}/{o.shape} vs param {p.shape}")
                src_dtypes.add(f.dtype)
                src_dtypes.add(o.dtype)
                f32 = f.astype(jnp.float32)
                o32 = o.astype(jnp.float32)
                F = F + f32
                G = G + f32 * o32
                c_const = c_const + jnp.sum(f32 * o32 * o32)
            f_parts.append(F)
            g2_parts.append(2.0 * G)
            n += int(p.size)

        if self._static_dtype is not None:
            static_dtype = jnp.dtype(self._static_dtype)
        elif len(src_dtypes) == 1:
            static_dtype = jnp.dtype(src_dtypes.pop())
        else:
            static_dtype = jnp.dtype(jnp.float32)

        param_dtypes = {jnp.asarray(p).dtype for _, p in named_params}
        param_dtype = (jnp.dtype(param_dtypes.pop()) if len(param_dtypes) == 1
                       else jnp.dtype(jnp.float32))

        bytes_sum = 2 * static_dtype.itemsize + param_dtype.itemsize
        layout = _plan_layout(n, bytes_sum)
        block_rows = layout[0]
        # Double-buffered inputs + slack; >= v5e's 16 MiB default when needed,
        # always far below v7x's 64 MiB physical VMEM.
        vmem_limit = int(min(max(2 * block_rows * LANES * bytes_sum + (6 << 20),
                                 20 << 20), 32 << 20))

        f2d = _to_slab(f_parts, layout, static_dtype)
        g2_2d = _to_slab(g2_parts, layout, static_dtype)
        self._static_cache = (key, f2d, g2_2d, c_const, layout, param_dtype, vmem_limit)
        return self._static_cache[1:]

    def forward(self, named_params):
        named_params = list(named_params)
        net_loss = jnp.zeros((1,), dtype=jnp.float32)
        if not self.ewc_lambda or not self.tasks_encountered or not named_params:
            return net_loss

        f2d, g2_2d, c_const, layout, param_dtype, vmem_limit = \
            self._static_slabs(named_params)

        # Only the live parameters are re-flattened each call, once (no per-task
        # replication thanks to the F/2G/C collapse).
        p2d = _to_slab([p for _, p in named_params], layout, param_dtype)

        quad = _ewc_quadratic_sum(f2d, g2_2d, p2d, layout, vmem_limit)
        net_loss = net_loss + quad + c_const
        return net_loss * (self.ewc_lambda / 2)

    def regularize(self, named_params):
        return self.forward(named_params)

    # TODO(synk): update_fisher_optpar requires running a model + autograd over a
    # dataset; it is training-loop glue, not a kernel, and is out of scope. After
    # consolidating a new task, the static-slab cache is rebuilt automatically
    # (key includes tasks_encountered); call invalidate_cache() if you mutate
    # fisher/optpar of an existing task in place.


def _reference_loss(ewc, named_params):
    """Pure-JAX reference (direct per-task form) for correctness checking."""
    named_params = list(named_params)
    loss = jnp.zeros((1,), dtype=jnp.float32)
    for task_id in ewc.tasks_encountered:
        for name, p in named_params:
            f = jnp.asarray(ewc.fisher[task_id][name]).astype(jnp.float32)
            o = jnp.asarray(ewc.optpar[task_id][name]).astype(jnp.float32)
            loss = loss + jnp.sum(f * (o - jnp.asarray(p).astype(jnp.float32)) ** 2)
    return loss * ewc.ewc_lambda / 2


if __name__ == "__main__":
    key = jax.random.PRNGKey(0)

    def make_param_dict(key, shapes, dtype=jnp.float32):
        out = {}
        for name, shape in sorted(shapes.items()):
            key, sub = jax.random.split(key)
            out[name] = jax.random.normal(sub, shape, dtype=jnp.float32).astype(dtype)
        return key, out

    def make_ewc(key, shapes, task_ids, fo_dtype=jnp.float32, static_dtype=None):
        ewc = EWC(static_dtype=static_dtype)
        for task_id in task_ids:
            ewc.tasks_encountered.append(task_id)
            key, optpar = make_param_dict(key, shapes, dtype=fo_dtype)
            fisher = {}
            for name, shape in sorted(shapes.items()):
                key, sub = jax.random.split(key)
                # Fisher diagonals are non-negative (mean of squared grads).
                fisher[name] = jax.random.uniform(sub, shape, dtype=jnp.float32).astype(fo_dtype)
            ewc.fisher[task_id] = fisher
            ewc.optpar[task_id] = optpar
        return key, ewc

    # --- Test 1: small model, f32 everywhere, two tasks -----------------------
    small_shapes = {"conv.weight": (4, 4, 3, 3), "conv.bias": (4,),
                    "fc.weight": (10, 32), "fc.bias": (10,)}
    key, params = make_param_dict(key, small_shapes)
    named_params = list(params.items())
    key, ewc = make_ewc(key, small_shapes, task_ids=(0, 1))

    loss = jax.block_until_ready(ewc.regularize(named_params))
    ref = jax.block_until_ready(_reference_loss(ewc, named_params))
    assert loss.shape == (1,)
    assert jnp.allclose(loss, ref, rtol=1e-4, atol=1e-2), (loss, ref)

    # Second call exercises the cached F/2G/C slabs (same result).
    loss2 = jax.block_until_ready(ewc.regularize(named_params))
    assert jnp.allclose(loss2, ref, rtol=1e-4, atol=1e-2), (loss2, ref)

    # --- Test 2: medium model — exercises splits=2, chunked reduction + tail ---
    med_shapes = {"fc1.weight": (256, 1024), "fc1.bias": (1024,),
                  "fc2.weight": (1024, 64), "fc2.bias": (64,)}
    key, params_m = make_param_dict(key, med_shapes)
    named_params_m = list(params_m.items())
    key, ewc_m = make_ewc(key, med_shapes, task_ids=(0, 1))

    loss_m = jax.block_until_ready(ewc_m.regularize(named_params_m))
    ref_m = jax.block_until_ready(_reference_loss(ewc_m, named_params_m))
    assert loss_m.shape == (1,)
    assert jnp.allclose(loss_m, ref_m, rtol=1e-4, atol=1.0), (loss_m, ref_m)

    # --- Test 3: bf16-stored fisher/optpar, f32 params (mixed-dtype streams) ---
    key, params_b = make_param_dict(key, small_shapes)
    named_params_b = list(params_b.items())
    key, ewc_b = make_ewc(key, small_shapes, task_ids=(0,), fo_dtype=jnp.bfloat16)

    loss_b = jax.block_until_ready(ewc_b.regularize(named_params_b))
    ref_b = jax.block_until_ready(_reference_loss(ewc_b, named_params_b))
    assert loss_b.shape == (1,)
    assert jnp.allclose(loss_b, ref_b, rtol=2e-2, atol=2e-2), (loss_b, ref_b)

    # --- Test 4: f32 data, static slabs forced to bf16 (bandwidth mode) -------
    key, ewc_f = make_ewc(key, small_shapes, task_ids=(0, 1),
                          static_dtype=jnp.bfloat16)
    loss_f = jax.block_until_ready(ewc_f.regularize(named_params))
    ref_f = jax.block_until_ready(_reference_loss(ewc_f, named_params))
    assert loss_f.shape == (1,)
    assert jnp.allclose(loss_f, ref_f, rtol=2e-2, atol=2e-2), (loss_f, ref_f)

    print("KERNEL_OK")
</pallas_src>

<mosaic_0001>
module attributes {stable_mosaic.version = 11 : i64} {
  func.func @_ewc_kernel(%arg0: i32, %arg1: i32, %arg2: memref<16x128xf32, #tpu.memory_space<vmem>>, %arg3: memref<16x128xf32, #tpu.memory_space<vmem>>, %arg4: memref<16x128xf32, #tpu.memory_space<vmem>>, %arg5: memref<1x8x128xf32, #tpu.memory_space<vmem>>) attributes {dimension_semantics = [#tpu.dimension_semantics<parallel>, #tpu.dimension_semantics<arbitrary>], iteration_bounds = array<i64: 1, 1>, scalar_prefetch = 0 : i64, scratch_operands = 0 : i64, tpu.core_type = #tpu.core_type<tc>, window_params = [{transform_indices = @transform_0, window_bounds = array<i64: 16, 128>}, {transform_indices = @transform_1, window_bounds = array<i64: 16, 128>}, {transform_indices = @transform_2, window_bounds = array<i64: 16, 128>}, {transform_indices = @transform_3, window_bounds = array<i64: 1, 8, 128>}]} {
    %c0_i32 = arith.constant 0 : i32
    %0 = arith.cmpi eq, %arg1, %c0_i32 : i32
    %1 = arith.extui %0 : i1 to i32
    %c0_i32_0 = arith.constant 0 : i32
    %2 = arith.cmpi ne, %1, %c0_i32_0 : i32
    scf.if %2 {
      %cst_12 = arith.constant 0.000000e+00 : f32
      %14 = vector.broadcast %cst_12 : f32 to vector<1x8x128xf32>
      %c0_13 = arith.constant 0 : index
      %c0_14 = arith.constant 0 : index
      %c0_15 = arith.constant 0 : index
      %15 = vector.load %arg5[%c0_13, %c0_14, %c0_15] : memref<1x8x128xf32, #tpu.memory_space<vmem>>, vector<1x8x128xf32>
      tpu.vector_store %arg5[%c0_13, %c0_14, %c0_15], %14 {strides = array<i32>} : memref<1x8x128xf32, #tpu.memory_space<vmem>>, vector<1x8x128xf32>,
    } else {
    }
    %c0 = arith.constant 0 : index
    %c0_1 = arith.constant 0 : index
    %3 = vector.load %arg4[%c0, %c0_1] : memref<16x128xf32, #tpu.memory_space<vmem>>, vector<16x128xf32>
    %c0_2 = arith.constant 0 : index
    %c0_3 = arith.constant 0 : index
    %4 = vector.load %arg2[%c0_2, %c0_3] : memref<16x128xf32, #tpu.memory_space<vmem>>, vector<16x128xf32>
    %c0_4 = arith.constant 0 : index
    %c0_5 = arith.constant 0 : index
    %5 = vector.load %arg3[%c0_4, %c0_5] : memref<16x128xf32, #tpu.memory_space<vmem>>, vector<16x128xf32>
    %6 = arith.mulf %4, %3 : vector<16x128xf32>
    %7 = arith.subf %6, %5 : vector<16x128xf32>
    %8 = arith.mulf %3, %7 : vector<16x128xf32>
    %c0_6 = arith.constant 0 : index
    %c0_7 = arith.constant 0 : index
    %c0_8 = arith.constant 0 : index
    %9 = vector.load %arg5[%c0_6, %c0_7, %c0_8] : memref<1x8x128xf32, #tpu.memory_space<vmem>>, vector<1x8x128xf32>
    %10 = vector.shape_cast %8 : vector<16x128xf32> to vector<1x2x8x128xf32>
    %cst = arith.constant dense<0.000000e+00> : vector<1x8x128xf32>
    %11 = vector.multi_reduction <add>, %10, %cst [1] : vector<1x2x8x128xf32> to vector<1x8x128xf32>
    %12 = arith.addf %9, %11 : vector<1x8x128xf32>
    %c0_9 = arith.constant 0 : index
    %c0_10 = arith.constant 0 : index
    %c0_11 = arith.constant 0 : index
    %13 = vector.load %arg5[%c0_9, %c0_10, %c0_11] : memref<1x8x128xf32, #tpu.memory_space<vmem>>, vector<1x8x128xf32>
    tpu.vector_store %arg5[%c0_9, %c0_10, %c0_11], %12 {strides = array<i32>} : memref<1x8x128xf32, #tpu.memory_space<vmem>>, vector<1x8x128xf32>,
    return
  }
  func.func @transform_0(%arg0: i32, %arg1: i32) -> (i32, i32) {
    %c1_i32 = arith.constant 1 : i32
    %0 = arith.muli %arg0, %c1_i32 : i32
    %1 = arith.addi %0, %arg1 : i32
    %c0_i32 = arith.constant 0 : i32
    %c0_i32_0 = arith.constant 0 : i32
    return %1, %c0_i32 : i32, i32
  }
  func.func @transform_1(%arg0: i32, %arg1: i32) -> (i32, i32) {
    %c1_i32 = arith.constant 1 : i32
    %0 = arith.muli %arg0, %c1_i32 : i32
    %1 = arith.addi %0, %arg1 : i32
    %c0_i32 = arith.constant 0 : i32
    %c0_i32_0 = arith.constant 0 : i32
    return %1, %c0_i32 : i32, i32
  }
  func.func @transform_2(%arg0: i32, %arg1: i32) -> (i32, i32) {
    %c1_i32 = arith.constant 1 : i32
    %0 = arith.muli %arg0, %c1_i32 : i32
    %1 = arith.addi %0, %arg1 : i32
    %c0_i32 = arith.constant 0 : i32
    %c0_i32_0 = arith.constant 0 : i32
    return %1, %c0_i32 : i32, i32
  }
  func.func @transform_3(%arg0: i32, %arg1: i32) -> (i32, i32, i32) {
    %c0_i32 = arith.constant 0 : i32
    %c0_i32_0 = arith.constant 0 : i32
    %c0_i32_1 = arith.constant 0 : i32
    return %arg0, %c0_i32, %c0_i32_0 : i32, i32, i32
  }
}

</mosaic_0001>

<llo_original>
// kernel: tpu_custom_call.1
$region0: #{tpu_custom_call.1}
  #allocation0 [shape = 'u32[]', space=smem, size = 0x4, offset = 0x4, fixed_abs, tag = 'smem constant byte address 0x4 - core index']
  #allocation1 [shape = 'u32[144,128]{1,0:T(1,128)}', space=vmem, size = 0x12000, scoped, tag = 'internal scratch']
  %s0 = inlined_call_operand.hbm [shape: f32[16,128], index: 0, kind: input, shape index: {}]
  %s1 = inlined_call_operand.hbm [shape: f32[16,128], index: 1, kind: input, shape index: {}]
  %s2 = inlined_call_operand.hbm [shape: f32[16,128], index: 2, kind: input, shape index: {}]
  %s3 = inlined_call_operand.hbm [shape: f32[1,8,128], index: 3, kind: output, shape index: {}]
  %s4 = sld [smem:[#allocation0]]
  $region38: #{tpu_custom_call.1} parent=0
    _
  %s6 = ssub.s32 1, %s4
  %s7 = scalar_select 0, %s6, %s4
  $region1: #{tpu_custom_call.1} parent=0
    #allocation2 [shape = 'u8[8192]{0}', space=vmem, size = 0x2000, scoped, tag = 'input window, operand 0, single buffered']
    #allocation3 [shape = 's32[1]{0}', space=sflag, size = 0x4, scoped, tag = 'scoped memory for tpu_custom_call.1']
    #allocation4 [shape = 's32[1]{0}', space=sflag, size = 0x4, scoped, tag = 'scoped memory for tpu_custom_call.1']
    #allocation5 [shape = 'u8[8192]{0}', space=vmem, size = 0x2000, scoped, tag = 'input window, operand 1, single buffered']
    #allocation6 [shape = 's32[1]{0}', space=sflag, size = 0x4, scoped, tag = 'scoped memory for tpu_custom_call.1']
    #allocation7 [shape = 'u8[8192]{0}', space=vmem, size = 0x2000, scoped, tag = 'input window, operand 2, single buffered']
    #allocation8 [shape = 'u8[4096]{0}', space=vmem, size = 0x1000, scoped, tag = 'output window, operand 0, single buffered']
    %8 = vsyncpa [#allocation3], 0
    %9 = vsyncpa [#allocation6], 0
    %10 = vsyncpa [#allocation4], 0
    // Predicated region
    $region2: #{tpu_custom_call.1} parent=1 // pred_check
      _
    $region3: #{tpu_custom_call.1} parent=1 // pred_check_branch
      %12 = sbr.rel (0) target = $region5
    $region4: #{tpu_custom_call.1} parent=1 // pred_region
      %s13 = sadd.s32 0, 0
      %s14 = smul.u32 2, %s13
      %s16 = ssub.s32 256, 256
      %17 = vsyncadd [#allocation3], %s16
      %s18 = smul.addr %s14, 128
      %s19 = scalar_lea.hbm %s0, %s18
      %s20 = sshll.u32 [#allocation2], 4
      %s21 = int_to_ptr.vmem [resolvable:$true] %s20
      %26 = dma.hbm_to_vmem [thread:$0]  %s19, 256, %s21, [#allocation3], 128, 128, 8
    $region5: #{tpu_custom_call.1} parent=1 // pred_fallthru
      _
    // Predicated region
    $region6: #{tpu_custom_call.1} parent=1 // pred_check
      _
    $region7: #{tpu_custom_call.1} parent=1 // pred_check_branch
      %28 = sbr.rel (0) target = $region9
    $region8: #{tpu_custom_call.1} parent=1 // pred_region
      %s29 = sadd.s32 0, 0
      %s30 = smul.u32 2, %s29
      %s32 = ssub.s32 256, 256
      %33 = vsyncadd [#allocation6], %s32
      %s34 = smul.addr %s30, 128
      %s35 = scalar_lea.hbm %s1, %s34
      %s36 = sshll.u32 [#allocation5], 4
      %s37 = int_to_ptr.vmem [resolvable:$true] %s36
      %42 = dma.hbm_to_vmem [thread:$0]  %s35, 256, %s37, [#allocation6], 128, 128, 8
    $region9: #{tpu_custom_call.1} parent=1 // pred_fallthru
      _
    // Predicated region
    $region10: #{tpu_custom_call.1} parent=1 // pred_check
      _
    $region11: #{tpu_custom_call.1} parent=1 // pred_check_branch
      %44 = sbr.rel (0) target = $region13
    $region12: #{tpu_custom_call.1} parent=1 // pred_region
      %s45 = sadd.s32 0, 0
      %s46 = smul.u32 2, %s45
      %s48 = ssub.s32 256, 256
      %49 = vsyncadd [#allocation6], %s48
      %s50 = smul.addr %s46, 128
      %s51 = scalar_lea.hbm %s2, %s50
      %s52 = sshll.u32 [#allocation7], 4
      %s53 = int_to_ptr.vmem [resolvable:$true] %s52
      %58 = dma.hbm_to_vmem [thread:$0]  %s51, 256, %s53, [#allocation6], 128, 128, 8
    $region13: #{tpu_custom_call.1} parent=1 // pred_fallthru
      _
    // Predicated region
    $region14: #{tpu_custom_call.1} parent=1 // pred_check
      _
    $region15: #{tpu_custom_call.1} parent=1 // pred_check_branch
      %60 = sbr.rel (0) target = $region17
    $region16: #{tpu_custom_call.1} parent=1 // pred_region
      %61 = dma.done [#allocation3], 256
    $region17: #{tpu_custom_call.1} parent=1 // pred_fallthru
      _
    // Predicated region
    $region18: #{tpu_custom_call.1} parent=1 // pred_check
      _
    $region19: #{tpu_custom_call.1} parent=1 // pred_check_branch
      %63 = sbr.rel (0) target = $region21
    $region20: #{tpu_custom_call.1} parent=1 // pred_region
      %64 = dma.done [#allocation6], 256
    $region21: #{tpu_custom_call.1} parent=1 // pred_fallthru
      _
    // Predicated region
    $region22: #{tpu_custom_call.1} parent=1 // pred_check
      _
    $region23: #{tpu_custom_call.1} parent=1 // pred_check_branch
      %66 = sbr.rel (0) target = $region25
    $region24: #{tpu_custom_call.1} parent=1 // pred_region
      %67 = dma.done [#allocation6], 256
    $region25: #{tpu_custom_call.1} parent=1 // pred_fallthru
      _
    %s68 = sadd.s32 0, 0
    %s69 = smul.u32 2, %s68
    %s70 = sadd.s32 0, 0
    %s71 = smul.u32 2, %s70
    %s72 = sadd.s32 0, 0
    %s73 = smul.u32 2, %s72
    %p74 = scmp.eq.s32.totalorder 0, 0
    // Predicated region
    $region26: #{tpu_custom_call.1} parent=1 // pred_check
      %p75 = pneg %p74
    $region27: #{tpu_custom_call.1} parent=1 // pred_check_branch
      %77 = sbr.rel (%p75) target = $region29
    $region28: #{tpu_custom_call.1} parent=1 // pred_region
      %78 = vst [vmem:[#allocation8] sm:$0xff] 0.0
    $region29: #{tpu_custom_call.1} parent=1 // pred_fallthru
      _
    %v79 = vld [vmem:[#allocation7] sm:$0xff]
    %v80 = vld [vmem:[#allocation7 + $0x8] sm:$0xff]
    %v81 = vld [vmem:[#allocation2] sm:$0xff]
    %v82 = vld [vmem:[#allocation2 + $0x8] sm:$0xff]
    %v83 = vld [vmem:[#allocation5] sm:$0xff]
    %v84 = vld [vmem:[#allocation5 + $0x8] sm:$0xff]
    %v85 = vmul.f32 %v81, %v79
    %v86 = vmul.f32 %v82, %v80
    %v87 = vsub.f32 %v85, %v83
    %v88 = vsub.f32 %v86, %v84
    %v89 = vmul.f32 %v79, %v87
    %v90 = vmul.f32 %v80, %v88
    %v91 = vld [vmem:[#allocation8] sm:$0xff]
    %v92 = vadd.f32 %v89, %v90
    %v93 = vadd.f32 %v91, %v92
    %94 = vst [vmem:[#allocation8] sm:$0xff] %v93
    // Predicated region
    $region30: #{tpu_custom_call.1} parent=1 // pred_check
      _
    $region31: #{tpu_custom_call.1} parent=1 // pred_check_branch
      %96 = sbr.rel (0) target = $region33
    $region32: #{tpu_custom_call.1} parent=1 // pred_region
      %s98 = ssub.s32 128, 128
      %99 = vsyncadd [#allocation4], %s98
      %s101 = sshll.u32 [#allocation8], 4
      %s102 = int_to_ptr.vmem [resolvable:$true] %s101
      %104 = dma.vmem_to_hbm [thread:$0]  %s102, 128, %s3, [#allocation4]
    $region33: #{tpu_custom_call.1} parent=1 // pred_fallthru
      _
    // Predicated region
    $region34: #{tpu_custom_call.1} parent=1 // pred_check
      _
    $region35: #{tpu_custom_call.1} parent=1 // pred_check_branch
      %106 = sbr.rel (0) target = $region37
    $region36: #{tpu_custom_call.1} parent=1 // pred_region
      %107 = dma.done [#allocation4], 128
    $region37: #{tpu_custom_call.1} parent=1 // pred_fallthru
      _
    %108 = vsyncpa [#allocation3], 1
    %109 = vsyncpa [#allocation6], 1
    %110 = vsyncpa [#allocation4], 1

</llo_original>
